<compile_context>
chip_gen: v7x
topology: tpu7x:2x2x1
jax: 0.10.0
libtpu: 0.0.40
codegen_flags: <defaults>
</compile_context>

<pallas_src>
import functools

import jax
import jax.numpy as jnp
from jax import lax
from jax.experimental import pallas as pl
from jax.experimental.pallas import tpu as pltpu

LANE = 128


def _round_up(v, m):
    return ((v + m - 1) // m) * m


def _vmem_capacity_bytes():
    """Physical VMEM per TensorCore; conservative fallback if unqueryable."""
    try:
        info = pltpu.get_tpu_info()
        cap = getattr(info, "vmem_capacity_bytes", None)
        if cap:
            return int(cap)
    except Exception:
        pass
    return 64 * 1024 * 1024


def _vmem_estimate(tT, halo, K, Cin_p, Hp, out_isize, cdt_size):
    """Rough per-step VMEM working set (pipeline buffers + weights + temps)."""
    Yp = _round_up(tT + K - 1, 16)
    Wp = tT + halo
    weights = 2 * K * Cin_p * Hp * cdt_size + (Hp + Cin_p) * 4
    inputs = 2 * 2 * tT * Cin_p * cdt_size          # two window specs, x2 buffers
    outputs = 2 * tT * Cin_p * out_isize
    temps = (Wp * Cin_p * 4                          # fp32 window
             + Yp * K * Cin_p * (4 + cdt_size)       # im2col fp32 + cast copy
             + Yp * Hp * 4                           # fp32 intermediate
             + 2 * tT * Hp * cdt_size                # live per-tap conv2 operands
             + tT * Cin_p * 4)                       # fp32 accumulator
    return weights + inputs + outputs + temps


def _mlc1d_kernel(xa_ref, xb_ref, w1_ref, b1_ref, w2_ref, b2_ref, o_ref,
                  *, K, pad, T1, tT, Yp, halo, compute_dtype):
    """One (batch, time-tile) step of conv1 -> relu -> (dropout=id) -> conv2.

    xa_ref : (1, 1, tT, Cin_p)  current tile of the zero-padded input
    xb_ref : (1, 1, tT, Cin_p)  next tile (right-halo source)
    w1_ref : (K*Cin_p, Hp)      conv1 weight as an im2col slab (compute dtype)
    b1_ref : (1, Hp)            fp32
    w2_ref : (K*Hp, Cin_p)      conv2 weight, per-tap matrices stacked (compute dtype)
    b2_ref : (1, Cin_p)         fp32
    o_ref  : (1, tT, Cin_p)     output tile
    """
    Hp = w1_ref.shape[1]
    Cin_p = w2_ref.shape[1]
    t0 = pl.program_id(1) * tT

    # -- one aligned load of the (tT + halo, Cin_p) window, upcast to fp32 --
    xw = jnp.concatenate(
        [xa_ref[0, 0], xb_ref[0, 0, :halo, :]], axis=0).astype(jnp.float32)

    # -- conv1 as a single im2col matmul -------------------------------------
    # intermediate row r (global u = t0 - pad + r) reads window rows r..r+K-1.
    cols = jnp.concatenate([xw[k:k + Yp, :] for k in range(K)], axis=1)
    y = jnp.dot(cols.astype(compute_dtype), w1_ref[...],
                preferred_element_type=jnp.float32)
    y = jnp.maximum(y + b1_ref[...], 0.0)

    # Rows landing in the zero-padded border of the intermediate (u < 0 or
    # u >= T1) must contribute exactly 0 to conv2 (they are *post*-ReLU pads).
    r = lax.broadcasted_iota(jnp.int32, (Yp, 1), 0)
    u = t0 - pad + r
    y = jnp.where((u >= 0) & (u < T1), y, 0.0)

    # TODO(synk): dropout is identity here (inference); training-mode dropout
    # would use pltpu.prng_seed / pltpu.prng_random_bits on `y`.

    # -- conv2: per-tap matmuls straight off the fp32 intermediate -----------
    acc = jnp.zeros((tT, Cin_p), jnp.float32)
    for k in range(K):
        acc = acc + jnp.dot(y[k:k + tT, :].astype(compute_dtype),
                            w2_ref[k * Hp:(k + 1) * Hp, :],
                            preferred_element_type=jnp.float32)
    o_ref[0] = (acc + b2_ref[...]).astype(o_ref.dtype)


def multi_layered_conv1d(x, w1, b1, w2, b2, kernel_size, *,
                         time_tile=None, compute_dtype=jnp.bfloat16):
    """x: (B, T, Cin).  w1: (H, Cin, K), b1: (H,), w2: (Cin, H, K), b2: (Cin,)."""
    B, T, Cin = x.shape
    H = w1.shape[0]
    K = int(kernel_size)
    pad = (K - 1) // 2
    # PyTorch Conv1d output length: L_out = L_in + 2*pad - K + 1
    T1 = T + 2 * pad - K + 1
    T2 = T1 + 2 * pad - K + 1
    assert T1 > 0 and T2 > 0

    # Lane-dense channel dims (padded channels are zero in both activations
    # and weights, so the result is unchanged; sliced off at the end).
    Cin_p = _round_up(Cin, LANE)
    Hp = _round_up(H, LANE)

    cdt_size = jnp.dtype(compute_dtype).itemsize
    out_dtype = x.dtype
    out_isize = jnp.dtype(out_dtype).itemsize

    # ---- generation-aware VMEM limit & time tile ----------------------------
    cap = _vmem_capacity_bytes()
    if cap <= (64 << 20):                          # 64 MiB parts: keep headroom
        vmem_limit = int(cap * 0.8)
    else:                                          # 128 MiB parts
        vmem_limit = min(int(cap * 0.85), 112 << 20)

    # Right-halo rows taken from the next tile (independent of tT for tT%16==0):
    # round_up(K-1,16) alignment rows + (K-1) conv2 halo rows, rounded to 16.
    halo = max(16, _round_up(_round_up(K - 1, 16) + K - 1, 16))

    if time_tile is None:
        tT = 512 if cap >= (96 << 20) else 128
    else:
        tT = int(time_tile)
    tT = _round_up(max(1, min(tT, _round_up(T2, 16))), 16)   # 8/16-aligned tile
    tT = max(tT, halo, 32)
    budget = int(0.7 * vmem_limit)
    floor = max(64, halo)
    while tT > floor and _vmem_estimate(tT, halo, K, Cin_p, Hp,
                                        out_isize, cdt_size) > budget:
        tT = max(floor, _round_up(tT // 2, 16))

    nT = pl.cdiv(T2, tT)
    Yp = _round_up(tT + K - 1, 16)      # conv1 rows computed per tile (halo'd)
    assert tT % 16 == 0 and halo <= tT
    assert Yp + K - 1 <= tT + halo

    # ---- one-time input staging: pad time + channels, cast, tile -----------
    # With a left pad of 2*pad, the window needed by output tile t starts
    # exactly at padded row t*tT and spans tT + halo rows (tiles t and t+1).
    # TODO(synk): this pad+cast is one extra HBM pass over the activation; a
    # clamped manual-DMA variant (memory_space=pl.ANY) could remove it.
    Tp = (nT + 1) * tT
    left = 2 * pad
    right = Tp - left - T
    assert right >= 0
    xp = jnp.pad(x.astype(compute_dtype),
                 ((0, 0), (left, right), (0, Cin_p - Cin)))
    xt = xp.reshape(B, nT + 1, tT, Cin_p)

    # ---- weights as 2-D, zero-padded, compute-dtype slabs -------------------
    # conv1: im2col column (k*Cin_p + c) -> row (k*Cin_p + c) of (K*Cin_p, Hp).
    w1_p = jnp.zeros((K, Cin_p, Hp), jnp.float32)
    w1_p = w1_p.at[:, :Cin, :H].set(jnp.transpose(w1, (2, 1, 0)))
    w1_2d = w1_p.reshape(K * Cin_p, Hp).astype(compute_dtype)
    # conv2: tap k occupies rows [k*Hp, (k+1)*Hp) of (K*Hp, Cin_p).
    w2_p = jnp.zeros((K, Hp, Cin_p), jnp.float32)
    w2_p = w2_p.at[:, :H, :Cin].set(jnp.transpose(w2, (2, 1, 0)))
    w2_2d = w2_p.reshape(K * Hp, Cin_p).astype(compute_dtype)
    b1_p = jnp.zeros((1, Hp), jnp.float32).at[0, :H].set(b1.astype(jnp.float32))
    b2_p = jnp.zeros((1, Cin_p), jnp.float32).at[0, :Cin].set(b2.astype(jnp.float32))

    kernel = functools.partial(_mlc1d_kernel, K=K, pad=pad, T1=T1, tT=tT,
                               Yp=Yp, halo=halo, compute_dtype=compute_dtype)

    cost = pl.CostEstimate(
        flops=int(2 * B * nT * K * Cin_p * Hp * (Yp + tT)),
        transcendentals=0,
        bytes_accessed=int(B * nT * 2 * tT * Cin_p * cdt_size   # tiled input (x2 halo)
                           + 2 * K * Cin_p * Hp * cdt_size      # both weights
                           + (Hp + Cin_p) * 4                   # biases
                           + B * nT * tT * Cin_p * out_isize))  # output

    out_p = pl.pallas_call(
        kernel,
        out_shape=jax.ShapeDtypeStruct((B, nT * tT, Cin_p), out_dtype),
        grid_spec=pltpu.PrefetchScalarGridSpec(
            num_scalar_prefetch=0,
            grid=(B, nT),
            in_specs=[
                # Halo-tiled input: current tile + next tile; VMEM is O(tT).
                pl.BlockSpec((1, 1, tT, Cin_p), lambda b, t: (b, t, 0, 0)),
                pl.BlockSpec((1, 1, tT, Cin_p), lambda b, t: (b, t + 1, 0, 0)),
                # Weights / biases: constant index_map -> single-buffered.
                pl.BlockSpec((K * Cin_p, Hp), lambda b, t: (0, 0),
                             pipeline_mode=pl.Buffered(1)),
                pl.BlockSpec((1, Hp), lambda b, t: (0, 0),
                             pipeline_mode=pl.Buffered(1)),
                pl.BlockSpec((K * Hp, Cin_p), lambda b, t: (0, 0),
                             pipeline_mode=pl.Buffered(1)),
                pl.BlockSpec((1, Cin_p), lambda b, t: (0, 0),
                             pipeline_mode=pl.Buffered(1)),
            ],
            out_specs=pl.BlockSpec((1, tT, Cin_p), lambda b, t: (b, t, 0)),
        ),
        compiler_params=pltpu.CompilerParams(
            dimension_semantics=("parallel", "parallel"),
            vmem_limit_bytes=int(vmem_limit)),
        cost_estimate=cost,
    )(xt, xt, w1_2d, b1_p, w2_2d, b2_p)

    # Strip the time / channel padding added for tiling and lane density.
    return out_p[:, :T2, :Cin]


def _reference(x, w1, b1, w2, b2, kernel_size):
    """Pure-JAX reference via lax.conv_general_dilated (matches torch Conv1d)."""
    pad = (kernel_size - 1) // 2
    xc = jnp.transpose(x, (0, 2, 1))  # (B, Cin, T) == x.transpose(-1, 1)
    y = lax.conv_general_dilated(xc, w1, window_strides=(1,),
                                 padding=[(pad, pad)],
                                 dimension_numbers=("NCH", "OIH", "NCH"))
    y = jax.nn.relu(y + b1[None, :, None])
    z = lax.conv_general_dilated(y, w2, window_strides=(1,),
                                 padding=[(pad, pad)],
                                 dimension_numbers=("NCH", "OIH", "NCH"))
    z = z + b2[None, :, None]
    return jnp.transpose(z, (0, 2, 1))  # (B, T_out, Cin)


def _make_params(key, Cin, H, K):
    # torch.nn.Conv1d default init: uniform(+-1/sqrt(fan_in)), fan_in = C_in*K.
    k1, k2, k3, k4 = jax.random.split(key, 4)
    bound1 = 1.0 / (Cin * K) ** 0.5
    bound2 = 1.0 / (H * K) ** 0.5
    w1 = jax.random.uniform(k1, (H, Cin, K), jnp.float32, -bound1, bound1)
    b1 = jax.random.uniform(k2, (H,), jnp.float32, -bound1, bound1)
    w2 = jax.random.uniform(k3, (Cin, H, K), jnp.float32, -bound2, bound2)
    b2 = jax.random.uniform(k4, (Cin,), jnp.float32, -bound2, bound2)
    return w1, b1, w2, b2


def _check(x, w1, b1, w2, b2, K, **kw):
    out = jax.block_until_ready(
        multi_layered_conv1d(x, w1, b1, w2, b2, K, **kw))
    # Reference in fp32 on bf16-quantized operands (matches the kernel's MXU
    # input precision; remaining deltas are the bf16 intermediate + acc order).
    q = lambda a: a.astype(jnp.bfloat16).astype(jnp.float32)
    ref = _reference(q(x), q(w1), b1, q(w2), b2, K)
    assert out.shape == ref.shape, (out.shape, ref.shape)
    err = float(jnp.max(jnp.abs(out - ref)))
    assert err < 2e-2, err
    return err


if __name__ == "__main__":
    key = jax.random.PRNGKey(0)
    kx1, kp1, kx2, kp2 = jax.random.split(key, 4)

    # Small config (single time tile, lane-padded channels).
    B, T, Cin, H, K = 2, 16, 4, 32, 3
    x = jax.random.normal(kx1, (B, T, Cin), dtype=jnp.float32)
    w1, b1, w2, b2 = _make_params(kp1, Cin, H, K)
    _check(x, w1, b1, w2, b2, K)

    # Longer sequence exercising the (batch, time-tile) grid: 3 time tiles.
    B, T, Cin, H, K = 1, 384, 8, 64, 5
    x = jax.random.normal(kx2, (B, T, Cin), dtype=jnp.float32)
    w1, b1, w2, b2 = _make_params(kp2, Cin, H, K)
    _check(x, w1, b1, w2, b2, K, time_tile=128)

    print("KERNEL_OK")
</pallas_src>

<mosaic_0001>
module attributes {stable_mosaic.version = 11 : i64} {
  func.func @_mlc1d_kernel(%arg0: i32, %arg1: i32, %arg2: memref<1x1x32x128xbf16, #tpu.memory_space<vmem>>, %arg3: memref<1x1x32x128xbf16, #tpu.memory_space<vmem>>, %arg4: memref<384x128xbf16, #tpu.memory_space<vmem>>, %arg5: memref<1x128xf32, #tpu.memory_space<vmem>>, %arg6: memref<384x128xbf16, #tpu.memory_space<vmem>>, %arg7: memref<1x128xf32, #tpu.memory_space<vmem>>, %arg8: memref<1x32x128xf32, #tpu.memory_space<vmem>>) attributes {dimension_semantics = [#tpu.dimension_semantics<parallel>, #tpu.dimension_semantics<parallel>], iteration_bounds = array<i64: 2, 1>, scalar_prefetch = 0 : i64, scratch_operands = 0 : i64, tpu.core_type = #tpu.core_type<tc>, window_params = [{transform_indices = @transform_0, window_bounds = array<i64: 1, 1, 32, 128>}, {transform_indices = @transform_1, window_bounds = array<i64: 1, 1, 32, 128>}, {pipeline_mode = #tpu.pipeline_mode<synchronous>, transform_indices = @transform_2, window_bounds = array<i64: 384, 128>}, {pipeline_mode = #tpu.pipeline_mode<synchronous>, transform_indices = @transform_3, window_bounds = array<i64: 1, 128>}, {pipeline_mode = #tpu.pipeline_mode<synchronous>, transform_indices = @transform_4, window_bounds = array<i64: 384, 128>}, {pipeline_mode = #tpu.pipeline_mode<synchronous>, transform_indices = @transform_5, window_bounds = array<i64: 1, 128>}, {transform_indices = @transform_6, window_bounds = array<i64: 1, 32, 128>}]} {
    %c32_i32 = arith.constant 32 : i32
    %0 = arith.muli %arg1, %c32_i32 : i32
    %c0 = arith.constant 0 : index
    %c0_0 = arith.constant 0 : index
    %c0_1 = arith.constant 0 : index
    %c0_2 = arith.constant 0 : index
    %1 = vector.load %arg2[%c0, %c0_0, %c0_1, %c0_2] : memref<1x1x32x128xbf16, #tpu.memory_space<vmem>>, vector<1x1x32x128xbf16>
    %2 = vector.shape_cast %1 : vector<1x1x32x128xbf16> to vector<32x128xbf16>
    %c0_3 = arith.constant 0 : index
    %c0_4 = arith.constant 0 : index
    %c0_5 = arith.constant 0 : index
    %c0_6 = arith.constant 0 : index
    %3 = vector.load %arg3[%c0_3, %c0_4, %c0_5, %c0_6] : memref<1x1x32x128xbf16, #tpu.memory_space<vmem>>, vector<1x1x32x128xbf16>
    %4 = vector.shape_cast %3 : vector<1x1x32x128xbf16> to vector<32x128xbf16>
    %5 = tpu.concatenate %2, %4 in 0 : vector<32x128xbf16>, vector<32x128xbf16> -> vector<64x128xbf16>
    %6 = arith.extf %5 : vector<64x128xbf16> to vector<64x128xf32>
    %7 = vector.extract_strided_slice %6 {offsets = [0, 0], sizes = [48, 128], strides = [1, 1]} : vector<64x128xf32> to vector<48x128xf32>
    %8 = vector.extract_strided_slice %6 {offsets = [1, 0], sizes = [48, 128], strides = [1, 1]} : vector<64x128xf32> to vector<48x128xf32>
    %9 = vector.extract_strided_slice %6 {offsets = [2, 0], sizes = [48, 128], strides = [1, 1]} : vector<64x128xf32> to vector<48x128xf32>
    %10 = tpu.concatenate %7, %8, %9 in 1 : vector<48x128xf32>, vector<48x128xf32>, vector<48x128xf32> -> vector<48x384xf32>
    %11 = arith.truncf %10 : vector<48x384xf32> to vector<48x384xbf16>
    %c0_7 = arith.constant 0 : index
    %c0_8 = arith.constant 0 : index
    %12 = vector.load %arg4[%c0_7, %c0_8] : memref<384x128xbf16, #tpu.memory_space<vmem>>, vector<384x128xbf16>
    %cst = arith.constant dense<0.000000e+00> : vector<48x128xf32>
    %13 = tpu.matmul %11, %12, %cst {dimension_numbers = #tpu.dot_dimension_numbers<[1], [0], [0], [1], [0, 0, 1, 1], [], []>} : vector<48x384xbf16>, vector<384x128xbf16>, vector<48x128xf32> -> vector<48x128xf32>
    %c0_9 = arith.constant 0 : index
    %c0_10 = arith.constant 0 : index
    %14 = vector.load %arg5[%c0_9, %c0_10] : memref<1x128xf32, #tpu.memory_space<vmem>>, vector<1x128xf32>
    %15 = vector.broadcast %14 : vector<1x128xf32> to vector<48x128xf32>
    %16 = arith.addf %13, %15 : vector<48x128xf32>
    %cst_11 = arith.constant 0.000000e+00 : f32
    %17 = vector.broadcast %cst_11 : f32 to vector<48x128xf32>
    %18 = arith.maximumf %16, %17 : vector<48x128xf32>
    %19 = tpu.iota {dimensions = array<i32: 0>} : vector<48x1xi32>
    %c1_i32 = arith.constant 1 : i32
    %20 = arith.subi %0, %c1_i32 : i32
    %21 = vector.broadcast %20 : i32 to vector<48x1xi32>
    %22 = arith.addi %21, %19 : vector<48x1xi32>
    %c0_i32 = arith.constant 0 : i32
    %23 = vector.broadcast %c0_i32 : i32 to vector<48x1xi32>
    %24 = arith.cmpi sge, %22, %23 : vector<48x1xi32>
    %c16_i32 = arith.constant 16 : i32
    %25 = vector.broadcast %c16_i32 : i32 to vector<48x1xi32>
    %26 = arith.cmpi slt, %22, %25 : vector<48x1xi32>
    %27 = arith.andi %24, %26 : vector<48x1xi1>
    %cst_12 = arith.constant 0.000000e+00 : f32
    %28 = vector.shape_cast %27 : vector<48x1xi1> to vector<48x1xi1>
    %29 = vector.broadcast %28 : vector<48x1xi1> to vector<48x128xi1>
    %30 = vector.broadcast %cst_12 : f32 to vector<48x128xf32>
    %31 = arith.select %29, %18, %30 : vector<48x128xi1>, vector<48x128xf32>
    %cst_13 = arith.constant 0.000000e+00 : f32
    %32 = vector.broadcast %cst_13 : f32 to vector<32x128xf32>
    %33 = vector.extract_strided_slice %31 {offsets = [0, 0], sizes = [32, 128], strides = [1, 1]} : vector<48x128xf32> to vector<32x128xf32>
    %34 = arith.truncf %33 : vector<32x128xf32> to vector<32x128xbf16>
    %c0_14 = arith.constant 0 : index
    %c0_15 = arith.constant 0 : index
    %35 = vector.load %arg6[%c0_14, %c0_15] : memref<384x128xbf16, #tpu.memory_space<vmem>>, vector<128x128xbf16>
    %cst_16 = arith.constant dense<0.000000e+00> : vector<32x128xf32>
    %36 = tpu.matmul %34, %35, %cst_16 {dimension_numbers = #tpu.dot_dimension_numbers<[1], [0], [0], [1], [0, 0, 1, 1], [], []>} : vector<32x128xbf16>, vector<128x128xbf16>, vector<32x128xf32> -> vector<32x128xf32>
    %37 = arith.addf %32, %36 : vector<32x128xf32>
    %38 = vector.extract_strided_slice %31 {offsets = [1, 0], sizes = [32, 128], strides = [1, 1]} : vector<48x128xf32> to vector<32x128xf32>
    %39 = arith.truncf %38 : vector<32x128xf32> to vector<32x128xbf16>
    %c128 = arith.constant 128 : index
    %c0_17 = arith.constant 0 : index
    %40 = vector.load %arg6[%c128, %c0_17] : memref<384x128xbf16, #tpu.memory_space<vmem>>, vector<128x128xbf16>
    %cst_18 = arith.constant dense<0.000000e+00> : vector<32x128xf32>
    %41 = tpu.matmul %39, %40, %cst_18 {dimension_numbers = #tpu.dot_dimension_numbers<[1], [0], [0], [1], [0, 0, 1, 1], [], []>} : vector<32x128xbf16>, vector<128x128xbf16>, vector<32x128xf32> -> vector<32x128xf32>
    %42 = arith.addf %37, %41 : vector<32x128xf32>
    %43 = vector.extract_strided_slice %31 {offsets = [2, 0], sizes = [32, 128], strides = [1, 1]} : vector<48x128xf32> to vector<32x128xf32>
    %44 = arith.truncf %43 : vector<32x128xf32> to vector<32x128xbf16>
    %c256 = arith.constant 256 : index
    %c0_19 = arith.constant 0 : index
    %45 = vector.load %arg6[%c256, %c0_19] : memref<384x128xbf16, #tpu.memory_space<vmem>>, vector<128x128xbf16>
    %cst_20 = arith.constant dense<0.000000e+00> : vector<32x128xf32>
    %46 = tpu.matmul %44, %45, %cst_20 {dimension_numbers = #tpu.dot_dimension_numbers<[1], [0], [0], [1], [0, 0, 1, 1], [], []>} : vector<32x128xbf16>, vector<128x128xbf16>, vector<32x128xf32> -> vector<32x128xf32>
    %47 = arith.addf %42, %46 : vector<32x128xf32>
    %c0_21 = arith.constant 0 : index
    %c0_22 = arith.constant 0 : index
    %48 = vector.load %arg7[%c0_21, %c0_22] : memref<1x128xf32, #tpu.memory_space<vmem>>, vector<1x128xf32>
    %49 = vector.broadcast %48 : vector<1x128xf32> to vector<32x128xf32>
    %50 = arith.addf %47, %49 : vector<32x128xf32>
    %c0_23 = arith.constant 0 : index
    %c0_24 = arith.constant 0 : index
    %c0_25 = arith.constant 0 : index
    %51 = vector.load %arg8[%c0_23, %c0_24, %c0_25] : memref<1x32x128xf32, #tpu.memory_space<vmem>>, vector<1x32x128xf32>
    %52 = vector.shape_cast %51 : vector<1x32x128xf32> to vector<32x128xf32>
    %53 = vector.shape_cast %50 : vector<32x128xf32> to vector<1x32x128xf32>
    tpu.vector_store %arg8[%c0_23, %c0_24, %c0_25], %53 {strides = array<i32>} : memref<1x32x128xf32, #tpu.memory_space<vmem>>, vector<1x32x128xf32>,
    return
  }
  func.func @transform_0(%arg0: i32, %arg1: i32) -> (i32, i32, i32, i32) {
    %c0_i32 = arith.constant 0 : i32
    %c0_i32_0 = arith.constant 0 : i32
    %c0_i32_1 = arith.constant 0 : i32
    return %arg0, %arg1, %c0_i32, %c0_i32_0 : i32, i32, i32, i32
  }
  func.func @transform_1(%arg0: i32, %arg1: i32) -> (i32, i32, i32, i32) {
    %c1_i32 = arith.constant 1 : i32
    %0 = arith.addi %arg1, %c1_i32 : i32
    %c0_i32 = arith.constant 0 : i32
    %c0_i32_0 = arith.constant 0 : i32
    %c0_i32_1 = arith.constant 0 : i32
    return %arg0, %0, %c0_i32, %c0_i32_0 : i32, i32, i32, i32
  }
  func.func @transform_2(%arg0: i32, %arg1: i32) -> (i32, i32) {
    %c0_i32 = arith.constant 0 : i32
    %c0_i32_0 = arith.constant 0 : i32
    %c0_i32_1 = arith.constant 0 : i32
    return %c0_i32, %c0_i32_0 : i32, i32
  }
  func.func @transform_3(%arg0: i32, %arg1: i32) -> (i32, i32) {
    %c0_i32 = arith.constant 0 : i32
    %c0_i32_0 = arith.constant 0 : i32
    %c0_i32_1 = arith.constant 0 : i32
    return %c0_i32, %c0_i32_0 : i32, i32
  }
  func.func @transform_4(%arg0: i32, %arg1: i32) -> (i32, i32) {
    %c0_i32 = arith.constant 0 : i32
    %c0_i32_0 = arith.constant 0 : i32
    %c0_i32_1 = arith.constant 0 : i32
    return %c0_i32, %c0_i32_0 : i32, i32
  }
  func.func @transform_5(%arg0: i32, %arg1: i32) -> (i32, i32) {
    %c0_i32 = arith.constant 0 : i32
    %c0_i32_0 = arith.constant 0 : i32
    %c0_i32_1 = arith.constant 0 : i32
    return %c0_i32, %c0_i32_0 : i32, i32
  }
  func.func @transform_6(%arg0: i32, %arg1: i32) -> (i32, i32, i32) {
    %c0_i32 = arith.constant 0 : i32
    %c0_i32_0 = arith.constant 0 : i32
    return %arg0, %arg1, %c0_i32 : i32, i32, i32
  }
}

</mosaic_0001>

<llo_original>
// kernel: tpu_custom_call.1
$region0: #{tpu_custom_call.1}
  #allocation0 [shape = 'u32[]', space=smem, size = 0x4, offset = 0x4, fixed_abs, tag = 'smem constant byte address 0x4 - core index']
  #allocation1 [shape = 'u32[144,128]{1,0:T(1,128)}', space=vmem, size = 0x12000, scoped, tag = 'internal scratch']
  %s0 = inlined_call_operand.hbm [shape: bf16[2,2,32,128], index: 0, kind: input, shape index: {}]
  %s1 = inlined_call_operand.hbm [shape: bf16[2,2,32,128], index: 1, kind: input, shape index: {}]
  %s2 = inlined_call_operand.hbm [shape: bf16[384,128], index: 2, kind: input, shape index: {}]
  %s3 = inlined_call_operand.vmem [shape: f32[1,128], index: 3, kind: input, shape index: {}]
  %s4 = inlined_call_operand.hbm [shape: bf16[384,128], index: 4, kind: input, shape index: {}]
  %s5 = inlined_call_operand.vmem [shape: f32[1,128], index: 5, kind: input, shape index: {}]
  %s6 = inlined_call_operand.hbm [shape: f32[2,32,128], index: 6, kind: output, shape index: {}]
  %s7 = sld [smem:[#allocation0]]
  $region73: #{tpu_custom_call.1} parent=0
    _
  %s9 = ssub.s32 1, %s7
  %s10 = scalar_select 0, %s9, %s7
  $region1: #{tpu_custom_call.1} parent=0
    #allocation2 [shape = 'u8[16384]{0}', space=vmem, size = 0x4000, scoped, tag = 'input window, operand 0']
    #allocation3 [shape = 's32[2]{0}', space=sflag, size = 0x8, scoped, tag = 'scoped memory for tpu_custom_call.1']
    #allocation4 [shape = 's32[2]{0}', space=sflag, size = 0x8, scoped, tag = 'scoped memory for tpu_custom_call.1']
    #allocation5 [shape = 'u8[16384]{0}', space=vmem, size = 0x4000, scoped, tag = 'input window, operand 1']
    #allocation6 [shape = 's32[2]{0}', space=sflag, size = 0x8, scoped, tag = 'scoped memory for tpu_custom_call.1']
    #allocation7 [shape = 'u8[98304]{0}', space=vmem, size = 0x18000, scoped, tag = 'input window, operand 2, single buffered']
    #allocation8 [shape = 'u8[98304]{0}', space=vmem, size = 0x18000, scoped, tag = 'input window, operand 4, single buffered']
    #allocation9 [shape = 's32[1]{0}', space=sflag, size = 0x4, scoped, tag = 'scoped memory for tpu_custom_call.1']
    #allocation10 [shape = 'u8[32768]{0}', space=vmem, size = 0x8000, scoped, tag = 'output window, operand 0']
    %11 = vsyncpa [#allocation3], 0
    %s12 = scalar_lea.sflag [#allocation3], 1
    %13 = vsyncpa %s12, 0
    %14 = vsyncpa [#allocation6], 0
    %s15 = scalar_lea.sflag [#allocation6], 1
    %16 = vsyncpa %s15, 0
    %17 = vsyncpa [#allocation9], 0
    %18 = vsyncpa [#allocation4], 0
    %s19 = scalar_lea.sflag [#allocation4], 1
    %20 = vsyncpa %s19, 0
    loop: start=0, step=1, limit=4
    $region2: #{tpu_custom_call.1} parent=1 // loop_pre_header
      _
    $region3: #{tpu_custom_call.1} parent=1 // loop_header
      %s22 = sphi 0, %s26
      %p23 = scmp.ge.s32.totalorder %s22, 4
      %s29 = sphi 0, %s41
      %s30 = sphi 0, %s37
      %s31 = sphi 0, %s29
      %s32 = sphi 0, %s30
      %s33 = sphi 0, %s31
      %s34 = sphi 0, %s32
      %s46 = sphi 0, %s48
      %s49 = sphi 0, %s46
      %s50 = sphi 0, %s49
      %s66 = sphi 0, %s50
      %s76 = sphi 0, %s78
      %s79 = sphi 0, %s76
      %s80 = sphi 0, %s79
      %s96 = sphi 0, %s80
      %s100 = sphi 0, %s100
      %s102 = sphi 0, %s100
      %s103 = sphi 0, %s102
      %s117 = sphi 0, %s103
      %s121 = sphi 0, %s121
      %s123 = sphi 0, %s121
      %s124 = sphi 0, %s123
      %s138 = sphi 0, %s124
      %s142 = sphi 0, %s142
      %s144 = sphi 0, %s142
      %s145 = sphi 0, %s144
      %s159 = sphi 0, %s145
      %s163 = sphi 0, %s163
      %s165 = sphi 0, %s163
      %s166 = sphi 0, %s165
      %s180 = sphi 0, %s166
      %s188 = sphi 0, %s190
      %s191 = sphi 0, %s188
      %s192 = sphi 0, %s191
      %s208 = sphi 0, %s192
    $region4: #{tpu_custom_call.1} parent=1 // loop_header_branch
      %25 = sbr.rel (%p23) target = $region8
    $region5: #{tpu_custom_call.1} parent=1 // loop_body
      %s27 = ssub.s32 %s22, 1
      %s28 = ssub.s32 %s22, 2
      %s35 = sadd.s32 1, %s30
      %p36 = scmp.ge.s32.totalorder %s35, 1
      %s37 = scalar_select %p36, 0, %s35
      %s38 = sadd.s32 1, %s29
      %s39 = scalar_select %p36, %s38, %s29
      %p40 = scmp.ge.s32.totalorder %s39, 2
      %s41 = scalar_select %p40, 0, %s39
      %s42 = ssub.s32 %s29, %s41
      %s43 = ssub.s32 %s30, %s37
      %s44 = sor.u32 %s42, %s43
      %p45 = scmp.eq.s32.totalorder %s44, 0
      %s47 = sadd.s32 %s46, 1
      %s48 = scalar_select %p45, %s46, %s47
      %p51 = pneg %p45
      %p52 = scmp.eq.s32.totalorder %s22, 1
      %p53 = por %p51, %p52
      %p54 = scmp.ne.s32.totalorder %s46, %s49
      %p55 = scmp.eq.s32.totalorder %s22, 0
      %p56 = por %p54, %p55
      %p57 = scmp.ne.s32.totalorder %s46, %s49
      %p58 = scmp.eq.s32.totalorder %s27, 1
      %p59 = por %p57, %p58
      %p60 = scmp.ne.s32.totalorder %s49, %s50
      %p61 = scmp.eq.s32.totalorder %s27, 0
      %p62 = por %p60, %p61
      %p63 = scmp.ne.s32.totalorder %s49, %s50
      %p64 = scmp.eq.s32.totalorder %s28, 1
      %p65 = por %p63, %p64
      %p67 = scmp.ne.s32.totalorder %s50, %s66
      %p68 = scmp.eq.s32.totalorder %s28, 0
      %p69 = por %p67, %p68
      %s70 = sadd.s32 %s30, 1
      %s71 = sadd.s32 %s37, 1
      %s72 = ssub.s32 %s29, %s41
      %s73 = ssub.s32 %s70, %s71
      %s74 = sor.u32 %s72, %s73
      %p75 = scmp.eq.s32.totalorder %s74, 0
      %s77 = sadd.s32 %s76, 1
      %s78 = scalar_select %p75, %s76, %s77
      %p81 = pneg %p75
      %p82 = scmp.eq.s32.totalorder %s22, 1
      %p83 = por %p81, %p82
      %p84 = scmp.ne.s32.totalorder %s76, %s79
      %p85 = scmp.eq.s32.totalorder %s22, 0
      %p86 = por %p84, %p85
      %p87 = scmp.ne.s32.totalorder %s76, %s79
      %p88 = scmp.eq.s32.totalorder %s27, 1
      %p89 = por %p87, %p88
      %p90 = scmp.ne.s32.totalorder %s79, %s80
      %p91 = scmp.eq.s32.totalorder %s27, 0
      %p92 = por %p90, %p91
      %p93 = scmp.ne.s32.totalorder %s79, %s80
      %p94 = scmp.eq.s32.totalorder %s28, 1
      %p95 = por %p93, %p94
      %p97 = scmp.ne.s32.totalorder %s80, %s96
      %p98 = scmp.eq.s32.totalorder %s28, 0
      %p99 = por %p97, %p98
      %s101 = sadd.s32 %s100, 1
      %p104 = scmp.eq.s32.totalorder %s22, 1
      %p105 = scmp.ne.s32.totalorder %s100, %s102
      %p106 = scmp.eq.s32.totalorder %s22, 0
      %p107 = por %p105, %p106
      %p108 = scmp.ne.s32.totalorder %s100, %s102
      %p109 = scmp.eq.s32.totalorder %s27, 1
      %p110 = por %p108, %p109
      %p111 = scmp.ne.s32.totalorder %s102, %s103
      %p112 = scmp.eq.s32.totalorder %s27, 0
      %p113 = por %p111, %p112
      %p114 = scmp.ne.s32.totalorder %s102, %s103
      %p115 = scmp.eq.s32.totalorder %s28, 1
      %p116 = por %p114, %p115
      %p118 = scmp.ne.s32.totalorder %s103, %s117
      %p119 = scmp.eq.s32.totalorder %s28, 0
      %p120 = por %p118, %p119
      %s122 = sadd.s32 %s121, 1
      %p125 = scmp.eq.s32.totalorder %s22, 1
      %p126 = scmp.ne.s32.totalorder %s121, %s123
      %p127 = scmp.eq.s32.totalorder %s22, 0
      %p128 = por %p126, %p127
      %p129 = scmp.ne.s32.totalorder %s121, %s123
      %p130 = scmp.eq.s32.totalorder %s27, 1
      %p131 = por %p129, %p130
      %p132 = scmp.ne.s32.totalorder %s123, %s124
      %p133 = scmp.eq.s32.totalorder %s27, 0
      %p134 = por %p132, %p133
      %p135 = scmp.ne.s32.totalorder %s123, %s124
      %p136 = scmp.eq.s32.totalorder %s28, 1
      %p137 = por %p135, %p136
      %p139 = scmp.ne.s32.totalorder %s124, %s138
      %p140 = scmp.eq.s32.totalorder %s28, 0
      %p141 = por %p139, %p140
      %s143 = sadd.s32 %s142, 1
      %p146 = scmp.eq.s32.totalorder %s22, 1
      %p147 = scmp.ne.s32.totalorder %s142, %s144
      %p148 = scmp.eq.s32.totalorder %s22, 0
      %p149 = por %p147, %p148
      %p150 = scmp.ne.s32.totalorder %s142, %s144
      %p151 = scmp.eq.s32.totalorder %s27, 1
      %p152 = por %p150, %p151
      %p153 = scmp.ne.s32.totalorder %s144, %s145
      %p154 = scmp.eq.s32.totalorder %s27, 0
      %p155 = por %p153, %p154
      %p156 = scmp.ne.s32.totalorder %s144, %s145
      %p157 = scmp.eq.s32.totalorder %s28, 1
      %p158 = por %p156, %p157
      %p160 = scmp.ne.s32.totalorder %s145, %s159
      %p161 = scmp.eq.s32.totalorder %s28, 0
      %p162 = por %p160, %p161
      %s164 = sadd.s32 %s163, 1
      %p167 = scmp.eq.s32.totalorder %s22, 1
      %p168 = scmp.ne.s32.totalorder %s163, %s165
      %p169 = scmp.eq.s32.totalorder %s22, 0
      %p170 = por %p168, %p169
      %p171 = scmp.ne.s32.totalorder %s163, %s165
      %p172 = scmp.eq.s32.totalorder %s27, 1
      %p173 = por %p171, %p172
      %p174 = scmp.ne.s32.totalorder %s165, %s166
      %p175 = scmp.eq.s32.totalorder %s27, 0
      %p176 = por %p174, %p175
      %p177 = scmp.ne.s32.totalorder %s165, %s166
      %p178 = scmp.eq.s32.totalorder %s28, 1
      %p179 = por %p177, %p178
      %p181 = scmp.ne.s32.totalorder %s166, %s180
      %p182 = scmp.eq.s32.totalorder %s28, 0
      %p183 = por %p181, %p182
      %s184 = ssub.s32 %s29, %s41
      %s185 = ssub.s32 %s30, %s37
      %s186 = sor.u32 %s184, %s185
      %p187 = scmp.eq.s32.totalorder %s186, 0
      %s189 = sadd.s32 %s188, 1
      %s190 = scalar_select %p187, %s188, %s189
      %p193 = pneg %p187
      %p194 = scmp.eq.s32.totalorder %s22, 1
      %p195 = por %p193, %p194
      %p196 = scmp.ne.s32.totalorder %s188, %s191
      %p197 = scmp.eq.s32.totalorder %s22, 0
      %p198 = por %p196, %p197
      %p199 = scmp.ne.s32.totalorder %s188, %s191
      %p200 = scmp.eq.s32.totalorder %s27, 1
      %p201 = por %p199, %p200
      %p202 = scmp.ne.s32.totalorder %s191, %s192
      %p203 = scmp.eq.s32.totalorder %s27, 0
      %p204 = por %p202, %p203
      %p205 = scmp.ne.s32.totalorder %s191, %s192
      %p206 = scmp.eq.s32.totalorder %s28, 1
      %p207 = por %p205, %p206
      %p209 = scmp.ne.s32.totalorder %s192, %s208
      %p210 = scmp.eq.s32.totalorder %s28, 0
      %p211 = por %p209, %p210
      %p212 = scmp.le.s32.totalorder 1, %s22
      %p213 = scmp.lt.s32.totalorder %s22, 3
      %p214 = pnand %p212, %p213
      %p215 = pneg %p214
      // Predicated region
      $region9: #{tpu_custom_call.1} parent=5 // pred_check
        _
      $region10: #{tpu_custom_call.1} parent=5 // pred_check_branch
        %217 = sbr.rel (%p214) target = $region12
      $region11: #{tpu_custom_call.1} parent=5 // pred_region
        %s218 = ssub.s32 %s22, 1
        // Predicated region
        $region13: #{tpu_custom_call.1} parent=11 // pred_check
          %p219 = pneg %p113
        $region14: #{tpu_custom_call.1} parent=11 // pred_check_branch
          %221 = sbr.rel (%p219) target = $region16
        $region15: #{tpu_custom_call.1} parent=11 // pred_region
          %s223 = ssub.s32 3072, 3072
          %224 = vsyncadd [#allocation6], %s223
          %s225 = sshll.u32 [#allocation7], 4
          %s226 = int_to_ptr.vmem [resolvable:$true] %s225
          %231 = dma.hbm_to_vmem [thread:$0]  %s2, 3072, %s226, [#allocation6], 64, 64, 4
        $region16: #{tpu_custom_call.1} parent=11 // pred_fallthru
          _
        // Predicated region
        $region17: #{tpu_custom_call.1} parent=11 // pred_check
          %p232 = pneg %p134
        $region18: #{tpu_custom_call.1} parent=11 // pred_check_branch
          %234 = sbr.rel (%p232) target = $region20
        $region19: #{tpu_custom_call.1} parent=11 // pred_region
          _
        $region20: #{tpu_custom_call.1} parent=11 // pred_fallthru
          _
        // Predicated region
        $region21: #{tpu_custom_call.1} parent=11 // pred_check
          %p235 = pneg %p155
        $region22: #{tpu_custom_call.1} parent=11 // pred_check_branch
          %237 = sbr.rel (%p235) target = $region24
        $region23: #{tpu_custom_call.1} parent=11 // pred_region
          %s239 = ssub.s32 3072, 3072
          %240 = vsyncadd [#allocation9], %s239
          %s241 = sshll.u32 [#allocation8], 4
          %s242 = int_to_ptr.vmem [resolvable:$true] %s241
          %247 = dma.hbm_to_vmem [thread:$0]  %s4, 3072, %s242, [#allocation9], 64, 64, 4
        $region24: #{tpu_custom_call.1} parent=11 // pred_fallthru
          _
        // Predicated region
        $region25: #{tpu_custom_call.1} parent=11 // pred_check
          %p248 = pneg %p176
        $region26: #{tpu_custom_call.1} parent=11 // pred_check_branch
          %250 = sbr.rel (%p248) target = $region28
        $region27: #{tpu_custom_call.1} parent=11 // pred_region
          _
        $region28: #{tpu_custom_call.1} parent=11 // pred_fallthru
          _
      $region12: #{tpu_custom_call.1} parent=5 // pred_fallthru
        _
      %p251 = scmp.lt.s32.totalorder %s22, 2
      // Predicated region
      $region29: #{tpu_custom_call.1} parent=5 // pred_check
        %p252 = pneg %p251
      $region30: #{tpu_custom_call.1} parent=5 // pred_check_branch
        %254 = sbr.rel (%p252) target = $region32
      $region31: #{tpu_custom_call.1} parent=5 // pred_region
        // Predicated region
        $region33: #{tpu_custom_call.1} parent=31 // pred_check
          %p255 = pneg %p56
        $region34: #{tpu_custom_call.1} parent=31 // pred_check_branch
          %257 = sbr.rel (%p255) target = $region36
        $region35: #{tpu_custom_call.1} parent=31 // pred_region
          %s258 = sand.u32 %s46, 1
          %s259 = scalar_lea.sflag [#allocation3], %s258
          %s260 = sand.u32 %s46, 1
          %s261 = smul.addr %s260, 16
          %s262 = scalar_lea.vmem [#allocation2], %s261
          %s264 = ssub.s32 256, 256
          %265 = vsyncadd %s259, %s264
          %s266 = smul.addr %s30, 4
          %s267 = smul.addr %s29, 8
          %s268 = sadd.s32 %s266, %s267
          %s269 = smul.addr %s268, 64
          %s270 = scalar_lea.hbm %s0, %s269
          %s271 = sshll.u32 %s262, 4
          %s272 = int_to_ptr.vmem [resolvable:$true] %s271
          %277 = dma.hbm_to_vmem [thread:$0]  %s270, 256, %s272, %s259, 64, 64, 4
        $region36: #{tpu_custom_call.1} parent=31 // pred_fallthru
          _
        // Predicated region
        $region37: #{tpu_custom_call.1} parent=31 // pred_check
          %p278 = pneg %p86
        $region38: #{tpu_custom_call.1} parent=31 // pred_check_branch
          %280 = sbr.rel (%p278) target = $region40
        $region39: #{tpu_custom_call.1} parent=31 // pred_region
          %s281 = sand.u32 %s22, 1
          %s282 = scalar_lea.sflag [#allocation6], %s281
          %s283 = sand.u32 %s76, 1
          %s284 = smul.addr %s283, 16
          %s285 = scalar_lea.vmem [#allocation5], %s284
          %s286 = sadd.s32 %s30, 1
          %s288 = ssub.s32 256, 256
          %289 = vsyncadd %s282, %s288
          %s290 = smul.addr %s286, 4
          %s291 = smul.addr %s29, 8
          %s292 = sadd.s32 %s290, %s291
          %s293 = smul.addr %s292, 64
          %s294 = scalar_lea.hbm %s1, %s293
          %s295 = sshll.u32 %s285, 4
          %s296 = int_to_ptr.vmem [resolvable:$true] %s295
          %301 = dma.hbm_to_vmem [thread:$0]  %s294, 256, %s296, %s282, 64, 64, 4
        $region40: #{tpu_custom_call.1} parent=31 // pred_fallthru
          _
      $region32: #{tpu_custom_call.1} parent=5 // pred_fallthru
        _
      %p302 = scmp.le.s32.totalorder 1, %s22
      %p303 = scmp.lt.s32.totalorder %s22, 3
      %p304 = pnand %p302, %p303
      %p305 = pneg %p304
      // Predicated region
      $region41: #{tpu_custom_call.1} parent=5 // pred_check
        _
      $region42: #{tpu_custom_call.1} parent=5 // pred_check_branch
        %307 = sbr.rel (%p304) target = $region44
      $region43: #{tpu_custom_call.1} parent=5 // pred_region
        %s308 = ssub.s32 %s22, 1
        %s309 = sand.u32 %s49, 1
        %s310 = scalar_lea.sflag [#allocation3], %s309
        %s311 = sand.u32 %s49, 1
        %s312 = smul.addr %s311, 16
        %s313 = scalar_lea.vmem [#allocation2], %s312
        // Predicated region
        $region45: #{tpu_custom_call.1} parent=43 // pred_check
          %p314 = pneg %p62
        $region46: #{tpu_custom_call.1} parent=43 // pred_check_branch
          %316 = sbr.rel (%p314) target = $region48
        $region47: #{tpu_custom_call.1} parent=43 // pred_region
          %317 = dma.done %s310, 256
        $region48: #{tpu_custom_call.1} parent=43 // pred_fallthru
          _
        %s318 = sand.u32 %s27, 1
        %s319 = scalar_lea.sflag [#allocation6], %s318
        %s320 = sand.u32 %s79, 1
        %s321 = smul.addr %s320, 16
        %s322 = scalar_lea.vmem [#allocation5], %s321
        // Predicated region
        $region49: #{tpu_custom_call.1} parent=43 // pred_check
          %p323 = pneg %p92
        $region50: #{tpu_custom_call.1} parent=43 // pred_check_branch
          %325 = sbr.rel (%p323) target = $region52
        $region51: #{tpu_custom_call.1} parent=43 // pred_region
          %326 = dma.done %s319, 256
        $region52: #{tpu_custom_call.1} parent=43 // pred_fallthru
          _
        // Predicated region
        $region53: #{tpu_custom_call.1} parent=43 // pred_check
          %p327 = pneg %p113
        $region54: #{tpu_custom_call.1} parent=43 // pred_check_branch
          %329 = sbr.rel (%p327) target = $region56
        $region55: #{tpu_custom_call.1} parent=43 // pred_region
          %330 = dma.done [#allocation6], 3072
        $region56: #{tpu_custom_call.1} parent=43 // pred_fallthru
          _
        // Predicated region
        $region57: #{tpu_custom_call.1} parent=43 // pred_check
          %p331 = pneg %p155
        $region58: #{tpu_custom_call.1} parent=43 // pred_check_branch
          %333 = sbr.rel (%p331) target = $region60
        $region59: #{tpu_custom_call.1} parent=43 // pred_region
          %334 = dma.done [#allocation9], 3072
        $region60: #{tpu_custom_call.1} parent=43 // pred_fallthru
          _
        %s335 = sand.u32 %s49, 1
        %s336 = scalar_lea.sflag [#allocation3], %s335
        %s337 = sand.u32 %s49, 1
        %s338 = smul.addr %s337, 16
        %s339 = scalar_lea.vmem [#allocation2], %s338
        %p340 = pneg %p62
        %p341 = pneg %p59
        %s342 = sand.u32 %s27, 1
        %s343 = scalar_lea.sflag [#allocation6], %s342
        %s344 = sand.u32 %s79, 1
        %s345 = smul.addr %s344, 16
        %s346 = scalar_lea.vmem [#allocation5], %s345
        %p347 = pneg %p92
        %p348 = pneg %p89
        %p349 = pneg %p113
        %p350 = pneg %p110
        %p351 = pneg %p134
        %p352 = pneg %p131
        %p353 = pneg %p155
        %p354 = pneg %p152
        %p355 = pneg %p176
        %p356 = pneg %p173
        %p357 = pneg %p204
        %p358 = pneg %p201
        %s359 = sand.u32 %s191, 1
        %s360 = scalar_lea.sflag [#allocation4], %s359
        %s361 = sand.u32 %s191, 1
        %s362 = smul.addr %s361, 32
        %s363 = scalar_lea.vmem [#allocation10], %s362
        %s364 = sadd.s32 %s32, 1
        %s365 = smul.u32 4, %s32
        %s367 = smul.u32 %s32, 32
        %v368 = vld [vmem:[%s313] sm:$0xf]
        %v369 = vld [vmem:[%s313 + $0x4] sm:$0xf]
        %v370 = vld [vmem:[%s313 + $0x8] sm:$0xf]
        %v371 = vld [vmem:[%s313 + $0xc] sm:$0xf]
        %v372 = vld [vmem:[%s322] sm:$0xf]
        %v373 = vld [vmem:[%s322 + $0x4] sm:$0xf]
        %v374 = vld [vmem:[%s322 + $0x8] sm:$0xf]
        %v375 = vld [vmem:[%s322 + $0xc] sm:$0xf]
        %v380 = vunpack.c.l.b16 %v368
        %v381 = vunpack.c.l.b16 %v369
        %v382 = vunpack.c.l.b16 %v370
        %v383 = vunpack.c.l.b16 %v371
        %v384 = vpack.c.b16 %v381, %v380
        %v385 = vpack.c.b16 %v383, %v382
        %v392 = vunpack.c.l.b16 %v372
        %v393 = vunpack.c.l.b16 %v373
        %v394 = vunpack.c.l.b16 %v374
        %v395 = vunpack.c.l.b16 %v375
        %v396 = vpack.c.b16 %v393, %v392
        %v397 = vpack.c.b16 %v395, %v394
        %v400 = vunpack.c.l.bf16 %v384
        %v401 = vunpack.c.h.bf16 %v384
        %v402 = vunpack.c.l.bf16 %v385
        %v403 = vunpack.c.h.bf16 %v385
        %v404 = vunpack.c.l.bf16 %v396
        %v405 = vunpack.c.h.bf16 %v396
        %v406 = vunpack.c.l.bf16 %v397
        %vm414 = vcmask 1046528
        %v415 = vrot.slane %v400, 1
        %v416 = vrot.slane %v401, 1
        %v417 = vsel %vm414, %v415, %v416
        %v418 = vrot.slane %v402, 1
        %v419 = vsel %vm414, %v416, %v418
        %v420 = vrot.slane %v403, 1
        %v421 = vsel %vm414, %v418, %v420
        %v422 = vrot.slane %v404, 1
        %v423 = vsel %vm414, %v420, %v422
        %v424 = vrot.slane %v405, 1
        %v425 = vsel %vm414, %v422, %v424
        %v426 = vrot.slane %v406, 1
        %v427 = vsel %vm414, %v424, %v426
        %vm434 = vcmask 1045504
        %v435 = vrot.slane %v400, 2
        %v436 = vrot.slane %v401, 2
        %v437 = vsel %vm434, %v435, %v436
        %v438 = vrot.slane %v402, 2
        %v439 = vsel %vm434, %v436, %v438
        %v440 = vrot.slane %v403, 2
        %v441 = vsel %vm434, %v438, %v440
        %v442 = vrot.slane %v404, 2
        %v443 = vsel %vm434, %v440, %v442
        %v444 = vrot.slane %v405, 2
        %v445 = vsel %vm434, %v442, %v444
        %v446 = vrot.slane %v406, 2
        %v447 = vsel %vm434, %v444, %v446
        %v454 = vpack.c.bf16 %v401, %v400
        %v455 = vpack.c.bf16 %v419, %v417
        %v456 = vpack.c.bf16 %v439, %v437
        %v457 = vpack.c.bf16 %v403, %v402
        %v458 = vpack.c.bf16 %v423, %v421
        %v459 = vpack.c.bf16 %v443, %v441
        %v460 = vpack.c.bf16 %v405, %v404
        %v461 = vpack.c.bf16 %v427, %v425
        %v462 = vpack.c.bf16 %v447, %v445
        %v463 = vld [vmem:[#allocation7] sm:$0xf]
        %v464 = vld [vmem:[#allocation7 + $0x4] sm:$0xf]
        %v465 = vld [vmem:[#allocation7 + $0x8] sm:$0xf]
        %v466 = vld [vmem:[#allocation7 + $0xc] sm:$0xf]
        %v467 = vld [vmem:[#allocation7 + $0x10] sm:$0xf]
        %v468 = vld [vmem:[#allocation7 + $0x14] sm:$0xf]
        %v469 = vld [vmem:[#allocation7 + $0x18] sm:$0xf]
        %v470 = vld [vmem:[#allocation7 + $0x1c] sm:$0xf]
        %v471 = vld [vmem:[#allocation7 + $0x20] sm:$0xf]
        %v472 = vld [vmem:[#allocation7 + $0x24] sm:$0xf]
        %v473 = vld [vmem:[#allocation7 + $0x28] sm:$0xf]
        %v474 = vld [vmem:[#allocation7 + $0x2c] sm:$0xf]
        %v475 = vld [vmem:[#allocation7 + $0x30] sm:$0xf]
        %v476 = vld [vmem:[#allocation7 + $0x34] sm:$0xf]
        %v477 = vld [vmem:[#allocation7 + $0x38] sm:$0xf]
        %v478 = vld [vmem:[#allocation7 + $0x3c] sm:$0xf]
        %v479 = vld [vmem:[#allocation7 + $0x40] sm:$0xf]
        %v480 = vld [vmem:[#allocation7 + $0x44] sm:$0xf]
        %v481 = vld [vmem:[#allocation7 + $0x48] sm:$0xf]
        %v482 = vld [vmem:[#allocation7 + $0x4c] sm:$0xf]
        %v483 = vld [vmem:[#allocation7 + $0x50] sm:$0xf]
        %v484 = vld [vmem:[#allocation7 + $0x54] sm:$0xf]
        %v485 = vld [vmem:[#allocation7 + $0x58] sm:$0xf]
        %v486 = vld [vmem:[#allocation7 + $0x5c] sm:$0xf]
        %v487 = vld [vmem:[#allocation7 + $0x60] sm:$0xf]
        %v488 = vld [vmem:[#allocation7 + $0x64] sm:$0xf]
        %v489 = vld [vmem:[#allocation7 + $0x68] sm:$0xf]
        %v490 = vld [vmem:[#allocation7 + $0x6c] sm:$0xf]
        %v491 = vld [vmem:[#allocation7 + $0x70] sm:$0xf]
        %v492 = vld [vmem:[#allocation7 + $0x74] sm:$0xf]
        %v493 = vld [vmem:[#allocation7 + $0x78] sm:$0xf]
        %v494 = vld [vmem:[#allocation7 + $0x7c] sm:$0xf]
        %v495 = vld [vmem:[#allocation7 + $0x80] sm:$0xf]
        %v496 = vld [vmem:[#allocation7 + $0x84] sm:$0xf]
        %v497 = vld [vmem:[#allocation7 + $0x88] sm:$0xf]
        %v498 = vld [vmem:[#allocation7 + $0x8c] sm:$0xf]
        %v499 = vld [vmem:[#allocation7 + $0x90] sm:$0xf]
        %v500 = vld [vmem:[#allocation7 + $0x94] sm:$0xf]
        %v501 = vld [vmem:[#allocation7 + $0x98] sm:$0xf]
        %v502 = vld [vmem:[#allocation7 + $0x9c] sm:$0xf]
        %v503 = vld [vmem:[#allocation7 + $0xa0] sm:$0xf]
        %v504 = vld [vmem:[#allocation7 + $0xa4] sm:$0xf]
        %v505 = vld [vmem:[#allocation7 + $0xa8] sm:$0xf]
        %v506 = vld [vmem:[#allocation7 + $0xac] sm:$0xf]
        %v507 = vld [vmem:[#allocation7 + $0xb0] sm:$0xf]
        %v508 = vld [vmem:[#allocation7 + $0xb4] sm:$0xf]
        %v509 = vld [vmem:[#allocation7 + $0xb8] sm:$0xf]
        %v510 = vld [vmem:[#allocation7 + $0xbc] sm:$0xf]
        %v511 = vld [vmem:[%s3] sm:$0x1]
        %v513 = vlaneseq
        %v514 = vshrl.u32 %v513, 7
        %v515 = vsub.s32 0, %v514
        %v516 = vrot.slane %v511, %v515
        %v566 = vunpack.c.l.b16 %v463
        %v567 = vunpack.c.l.b16 %v464
        %v568 = vunpack.c.l.b16 %v465
        %v569 = vunpack.c.l.b16 %v466
        %v570 = vunpack.c.l.b16 %v467
        %v571 = vunpack.c.l.b16 %v468
        %v572 = vunpack.c.l.b16 %v469
        %v573 = vunpack.c.l.b16 %v470
        %v574 = vunpack.c.l.b16 %v471
        %v575 = vunpack.c.l.b16 %v472
        %v576 = vunpack.c.l.b16 %v473
        %v577 = vunpack.c.l.b16 %v474
        %v578 = vunpack.c.l.b16 %v475
        %v579 = vunpack.c.l.b16 %v476
        %v580 = vunpack.c.l.b16 %v477
        %v581 = vunpack.c.l.b16 %v478
        %v582 = vunpack.c.l.b16 %v479
        %v583 = vunpack.c.l.b16 %v480
        %v584 = vunpack.c.l.b16 %v481
        %v585 = vunpack.c.l.b16 %v482
        %v586 = vunpack.c.l.b16 %v483
        %v587 = vunpack.c.l.b16 %v484
        %v588 = vunpack.c.l.b16 %v485
        %v589 = vunpack.c.l.b16 %v486
        %v590 = vunpack.c.l.b16 %v487
        %v591 = vunpack.c.l.b16 %v488
        %v592 = vunpack.c.l.b16 %v489
        %v593 = vunpack.c.l.b16 %v490
        %v594 = vunpack.c.l.b16 %v491
        %v595 = vunpack.c.l.b16 %v492
        %v596 = vunpack.c.l.b16 %v493
        %v597 = vunpack.c.l.b16 %v494
        %v598 = vunpack.c.l.b16 %v495
        %v599 = vunpack.c.l.b16 %v496
        %v600 = vunpack.c.l.b16 %v497
        %v601 = vunpack.c.l.b16 %v498
        %v602 = vunpack.c.l.b16 %v499
        %v603 = vunpack.c.l.b16 %v500
        %v604 = vunpack.c.l.b16 %v501
        %v605 = vunpack.c.l.b16 %v502
        %v606 = vunpack.c.l.b16 %v503
        %v607 = vunpack.c.l.b16 %v504
        %v608 = vunpack.c.l.b16 %v505
        %v609 = vunpack.c.l.b16 %v506
        %v610 = vunpack.c.l.b16 %v507
        %v611 = vunpack.c.l.b16 %v508
        %v612 = vunpack.c.l.b16 %v509
        %v613 = vunpack.c.l.b16 %v510
        %v614 = vpack.c.b16 %v567, %v566
        %v615 = vpack.c.b16 %v569, %v568
        %v616 = vpack.c.b16 %v571, %v570
        %v617 = vpack.c.b16 %v573, %v572
        %v618 = vpack.c.b16 %v575, %v574
        %v619 = vpack.c.b16 %v577, %v576
        %v620 = vpack.c.b16 %v579, %v578
        %v621 = vpack.c.b16 %v581, %v580
        %v622 = vpack.c.b16 %v583, %v582
        %v623 = vpack.c.b16 %v585, %v584
        %v624 = vpack.c.b16 %v587, %v586
        %v625 = vpack.c.b16 %v589, %v588
        %v626 = vpack.c.b16 %v591, %v590
        %v627 = vpack.c.b16 %v593, %v592
        %v628 = vpack.c.b16 %v595, %v594
        %v629 = vpack.c.b16 %v597, %v596
        %v630 = vpack.c.b16 %v599, %v598
        %v631 = vpack.c.b16 %v601, %v600
        %v632 = vpack.c.b16 %v603, %v602
        %v633 = vpack.c.b16 %v605, %v604
        %v634 = vpack.c.b16 %v607, %v606
        %v635 = vpack.c.b16 %v609, %v608
        %v636 = vpack.c.b16 %v611, %v610
        %v637 = vpack.c.b16 %v613, %v612
        %662 = vmatprep.subr.bf16.mxu0 0
        %663 = vmatpush1.bf16.msra.mxu0 %v614
        %664 = vmatprep.subr.bf16.mxu0 0
        %665 = vmatpush1.bf16.msra.mxu0 %v615
        %666 = vmatprep.subr.bf16.mxu0 0
        %667 = vmatpush1.bf16.msra.mxu0 %v616
        %668 = vmatprep.subr.bf16.mxu0 0
        %669 = vmatpush1.bf16.msra.mxu0 %v617
        %670 = vmatprep.subr.bf16.mxu0 0
        %671 = vmatpush1.bf16.msra.mxu0 %v618
        %672 = vmatprep.subr.bf16.mxu0 0
        %673 = vmatpush1.bf16.msra.mxu0 %v619
        %674 = vmatprep.subr.bf16.mxu0 0
        %675 = vmatpush1.bf16.msra.mxu0 %v620
        %676 = vmatprep.subr.bf16.mxu0 0
        %677 = vmatpush1.bf16.msra.mxu0 %v621
        %678 = vmatprep.subr.bf16.mxu0 0
        %679 = vmatpush1.bf16.msra.mxu0 %v622
        %680 = vmatprep.subr.bf16.mxu0 0
        %681 = vmatpush1.bf16.msra.mxu0 %v623
        %682 = vmatprep.subr.bf16.mxu0 0
        %683 = vmatpush1.bf16.msra.mxu0 %v624
        %684 = vmatprep.subr.bf16.mxu0 0
        %685 = vmatpush1.bf16.msra.mxu0 %v625
        %686 = vmatprep.subr.bf16.mxu0 0
        %687 = vmatpush1.bf16.msra.mxu0 %v626
        %688 = vmatprep.subr.bf16.mxu0 0
        %689 = vmatpush1.bf16.msra.mxu0 %v627
        %690 = vmatprep.subr.bf16.mxu0 0
        %691 = vmatpush1.bf16.msra.mxu0 %v628
        %692 = vmatprep.subr.bf16.mxu0 0
        %693 = vmatpush1.bf16.msra.mxu0 %v629
        %694 = vmatprep.mubr.bf16.mxu0 %v455
        %695 = vmatmul.mubr.bf16.gmra.mrb[0].mxu0 %v454
        %v696 = vpop.f32.mrb[0].mxu0
        %v697 = vadd.f32 %v516, %v696
        %v698 = vpop.f32.mrb[0].mxu0
        %v699 = vpop.f32.mrb[0].mxu0
        %v700 = vadd.f32 %v516, %v699
        %v701 = vpop.f32.mrb[0].mxu0
        %702 = vmatprep.mubr.bf16.mxu0 %v458
        %703 = vmatmul.mubr.bf16.gmra.mrb[0].mxu0 %v457
        %v704 = vpop.f32.mrb[0].mxu0
        %v705 = vadd.f32 %v516, %v704
        %v706 = vpop.f32.mrb[0].mxu0
        %v707 = vpop.f32.mrb[0].mxu0
        %v708 = vadd.f32 %v516, %v707
        %v709 = vpop.f32.mrb[0].mxu0
        %710 = vmatprep.mubr.bf16.mxu0 %v461
        %711 = vmatmul.mubr.bf16.gmra.mrb[0].mxu0 %v460
        %v712 = vpop.f32.mrb[0].mxu0
        %v713 = vadd.f32 %v516, %v712
        %v714 = vpop.f32.mrb[0].mxu0
        %v715 = vpop.f32.mrb[0].mxu0
        %v716 = vpop.f32.mrb[0].mxu0
        %717 = vdwg.mxu0
        %718 = vmatprep.subr.bf16.mxu0 0
        %719 = vmatpush1.bf16.msra.mxu0 %v630
        %720 = vmatprep.subr.bf16.mxu0 0
        %721 = vmatpush1.bf16.msra.mxu0 %v631
        %722 = vmatprep.subr.bf16.mxu0 0
        %723 = vmatpush1.bf16.msra.mxu0 %v632
        %724 = vmatprep.subr.bf16.mxu0 0
        %725 = vmatpush1.bf16.msra.mxu0 %v633
        %726 = vmatprep.subr.bf16.mxu0 0
        %727 = vmatpush1.bf16.msra.mxu0 %v634
        %728 = vmatprep.subr.bf16.mxu0 0
        %729 = vmatpush1.bf16.msra.mxu0 %v635
        %730 = vmatprep.subr.bf16.mxu0 0
        %731 = vmatpush1.bf16.msra.mxu0 %v636
        %732 = vmatprep.subr.bf16.mxu0 0
        %733 = vmatpush1.bf16.msra.mxu0 %v637
        %734 = vmatprep.subr.bf16.mxu0 0
        %735 = vmatpush1.bf16.msra.mxu0 0
        %736 = vmatprep.subr.bf16.mxu0 0
        %737 = vmatpush1.bf16.msra.mxu0 0
        %738 = vmatprep.subr.bf16.mxu0 0
        %739 = vmatpush1.bf16.msra.mxu0 0
        %740 = vmatprep.subr.bf16.mxu0 0
        %741 = vmatpush1.bf16.msra.mxu0 0
        %742 = vmatprep.subr.bf16.mxu0 0
        %743 = vmatpush1.bf16.msra.mxu0 0
        %744 = vmatprep.subr.bf16.mxu0 0
        %745 = vmatpush1.bf16.msra.mxu0 0
        %746 = vmatprep.subr.bf16.mxu0 0
        %747 = vmatpush1.bf16.msra.mxu0 0
        %748 = vmatprep.subr.bf16.mxu0 0
        %749 = vmatpush1.bf16.msra.mxu0 0
        %750 = vmatprep.mubr.bf16.mxu0 0
        %751 = vmatmul.mubr.bf16.gmra.mrb[0].mxu0 %v456
        %v752 = vpop.f32.mrb[0].mxu0
        %v753 = vadd.f32 %v697, %v752
        %v754 = vpop.f32.mrb[0].mxu0
        %v755 = vpop.f32.mrb[0].mxu0
        %v756 = vadd.f32 %v700, %v755
        %v757 = vpop.f32.mrb[0].mxu0
        %758 = vmatprep.mubr.bf16.mxu0 0
        %759 = vmatmul.mubr.bf16.gmra.mrb[0].mxu0 %v459
        %v760 = vpop.f32.mrb[0].mxu0
        %v761 = vadd.f32 %v705, %v760
        %v762 = vpop.f32.mrb[0].mxu0
        %v763 = vpop.f32.mrb[0].mxu0
        %v764 = vadd.f32 %v708, %v763
        %v765 = vpop.f32.mrb[0].mxu0
        %766 = vmatprep.mubr.bf16.mxu0 0
        %767 = vmatmul.mubr.bf16.gmra.mrb[0].mxu0 %v462
        %v768 = vpop.f32.mrb[0].mxu0
        %v769 = vadd.f32 %v713, %v768
        %v770 = vpop.f32.mrb[0].mxu0
        %v771 = vpop.f32.mrb[0].mxu0
        %v772 = vpop.f32.mrb[0].mxu0
        %773 = vdwg.mxu0
        %v774 = vmax.f32 %v753, 0.0
        %v775 = vmax.f32 %v756, 0.0
        %v776 = vmax.f32 %v761, 0.0
        %v777 = vmax.f32 %v764, 0.0
        %v778 = vmax.f32 %v769, 0.0
        %v779 = vlaneseq
        %v780 = vshrl.u32 %v779, 7
        %v781 = vadd.s32 %v780, 8
        %v782 = vadd.s32 %v780, 16
        %v783 = vadd.s32 %v780, 24
        %v784 = vadd.s32 %v780, 32
        %s785 = ssub.s32 %s367, 1
        %v786 = vstv %s785
        %v787 = vadd.s32 %v786, %v780
        %v788 = vadd.s32 %v786, %v781
        %v789 = vadd.s32 %v786, %v782
        %v790 = vadd.s32 %v786, %v783
        %v791 = vadd.s32 %v786, %v784
        %vm792 = vcmp.ge.s32.totalorder %v787, 0
        %vm793 = vcmp.ge.s32.totalorder %v788, 0
        %vm794 = vcmp.ge.s32.totalorder %v789, 0
        %vm795 = vcmp.ge.s32.totalorder %v790, 0
        %vm796 = vcmp.ge.s32.totalorder %v791, 0
        %vm797 = vcmp.lt.s32.totalorder %v787, 16
        %vm798 = vcmp.lt.s32.totalorder %v788, 16
        %vm799 = vcmp.lt.s32.totalorder %v789, 16
        %vm800 = vcmp.lt.s32.totalorder %v790, 16
        %vm801 = vcmp.lt.s32.totalorder %v791, 16
        %vm802 = vmand %vm792, %vm797
        %vm803 = vmand %vm793, %vm798
        %vm804 = vmand %vm794, %vm799
        %vm805 = vmand %vm795, %vm800
        %vm806 = vmand %vm796, %vm801
        %v807 = vsel %vm802, 1, 0
        %v808 = vsel %vm803, 1, 0
        %v809 = vsel %vm804, 1, 0
        %v810 = vsel %vm805, 1, 0
        %v811 = vsel %vm806, 1, 0
        %vm812 = vcmp.eq.s32.totalorder %v807, 1
        %vm813 = vcmp.eq.s32.totalorder %v808, 1
        %vm814 = vcmp.eq.s32.totalorder %v809, 1
        %vm815 = vcmp.eq.s32.totalorder %v810, 1
        %vm816 = vcmp.eq.s32.totalorder %v811, 1
        %v817 = vsel %vm812, %v774, 0.0
        %v818 = vsel %vm813, %v775, 0.0
        %v819 = vsel %vm814, %v776, 0.0
        %v820 = vsel %vm815, %v777, 0.0
        %v821 = vsel %vm816, %v778, 0.0
        %v822 = vpack.c.bf16 %v818, %v817
        %v823 = vpack.c.bf16 %v820, %v819
        %v824 = vld [vmem:[#allocation8] sm:$0xf]
        %v825 = vld [vmem:[#allocation8 + $0x4] sm:$0xf]
        %v826 = vld [vmem:[#allocation8 + $0x8] sm:$0xf]
        %v827 = vld [vmem:[#allocation8 + $0xc] sm:$0xf]
        %v828 = vld [vmem:[#allocation8 + $0x10] sm:$0xf]
        %v829 = vld [vmem:[#allocation8 + $0x14] sm:$0xf]
        %v830 = vld [vmem:[#allocation8 + $0x18] sm:$0xf]
        %v831 = vld [vmem:[#allocation8 + $0x1c] sm:$0xf]
        %v832 = vld [vmem:[#allocation8 + $0x20] sm:$0xf]
        %v833 = vld [vmem:[#allocation8 + $0x24] sm:$0xf]
        %v834 = vld [vmem:[#allocation8 + $0x28] sm:$0xf]
        %v835 = vld [vmem:[#allocation8 + $0x2c] sm:$0xf]
        %v836 = vld [vmem:[#allocation8 + $0x30] sm:$0xf]
        %v837 = vld [vmem:[#allocation8 + $0x34] sm:$0xf]
        %v838 = vld [vmem:[#allocation8 + $0x38] sm:$0xf]
        %v839 = vld [vmem:[#allocation8 + $0x3c] sm:$0xf]
        %v840 = vpack.c.bf16 %v821, %v821
        %v841 = vld [vmem:[#allocation8 + $0x40] sm:$0xf]
        %v842 = vld [vmem:[#allocation8 + $0x44] sm:$0xf]
        %v843 = vld [vmem:[#allocation8 + $0x48] sm:$0xf]
        %v844 = vld [vmem:[#allocation8 + $0x4c] sm:$0xf]
        %v845 = vld [vmem:[#allocation8 + $0x50] sm:$0xf]
        %v846 = vld [vmem:[#allocation8 + $0x54] sm:$0xf]
        %v847 = vld [vmem:[#allocation8 + $0x58] sm:$0xf]
        %v848 = vld [vmem:[#allocation8 + $0x5c] sm:$0xf]
        %v849 = vld [vmem:[#allocation8 + $0x60] sm:$0xf]
        %v850 = vld [vmem:[#allocation8 + $0x64] sm:$0xf]
        %v851 = vld [vmem:[#allocation8 + $0x68] sm:$0xf]
        %v852 = vld [vmem:[#allocation8 + $0x6c] sm:$0xf]
        %v853 = vld [vmem:[#allocation8 + $0x70] sm:$0xf]
        %v854 = vld [vmem:[#allocation8 + $0x74] sm:$0xf]
        %v855 = vld [vmem:[#allocation8 + $0x78] sm:$0xf]
        %v856 = vld [vmem:[#allocation8 + $0x7c] sm:$0xf]
        %vm857 = vsmask.f32 7424
        %v859 = vshrl.u32 %v822, 16
        %v861 = vshll.u32 %v822, 16
        %v863 = vrot.slane %v861, 1
        %v864 = vor.u32 %v859, %v863
        %v866 = vshll.u32 %v823, 16
        %v868 = vrot.slane %v866, 1
        %v869 = vsel %vm857, %v864, %v868
        %v870 = vshrl.u32 %v823, 16
        %v872 = vor.u32 %v870, %v868
        %v874 = vshll.u32 %v840, 16
        %v876 = vrot.slane %v874, 1
        %v877 = vsel %vm857, %v872, %v876
        %v896 = vunpack.c.l.b16 %v841
        %v897 = vunpack.c.l.b16 %v842
        %v898 = vunpack.c.l.b16 %v843
        %v899 = vunpack.c.l.b16 %v844
        %v900 = vunpack.c.l.b16 %v845
        %v901 = vunpack.c.l.b16 %v846
        %v902 = vunpack.c.l.b16 %v847
        %v903 = vunpack.c.l.b16 %v848
        %v904 = vunpack.c.l.b16 %v849
        %v905 = vunpack.c.l.b16 %v850
        %v906 = vunpack.c.l.b16 %v851
        %v907 = vunpack.c.l.b16 %v852
        %v908 = vunpack.c.l.b16 %v853
        %v909 = vunpack.c.l.b16 %v854
        %v910 = vunpack.c.l.b16 %v855
        %v911 = vunpack.c.l.b16 %v856
        %v912 = vpack.c.b16 %v897, %v896
        %v913 = vpack.c.b16 %v899, %v898
        %v914 = vpack.c.b16 %v901, %v900
        %v915 = vpack.c.b16 %v903, %v902
        %v916 = vpack.c.b16 %v905, %v904
        %v917 = vpack.c.b16 %v907, %v906
        %v918 = vpack.c.b16 %v909, %v908
        %v919 = vpack.c.b16 %v911, %v910
        %928 = vmatprep.subr.bf16.mxu0 0
        %929 = vmatpush1.bf16.msra.mxu0 %v912
        %930 = vmatprep.subr.bf16.mxu0 0
        %931 = vmatpush1.bf16.msra.mxu0 %v913
        %932 = vmatprep.subr.bf16.mxu0 0
        %933 = vmatpush1.bf16.msra.mxu0 %v914
        %934 = vmatprep.subr.bf16.mxu0 0
        %935 = vmatpush1.bf16.msra.mxu0 %v915
        %936 = vmatprep.subr.bf16.mxu0 0
        %937 = vmatpush1.bf16.msra.mxu0 %v916
        %938 = vmatprep.subr.bf16.mxu0 0
        %939 = vmatpush1.bf16.msra.mxu0 %v917
        %940 = vmatprep.subr.bf16.mxu0 0
        %941 = vmatpush1.bf16.msra.mxu0 %v918
        %942 = vmatprep.subr.bf16.mxu0 0
        %943 = vmatpush1.bf16.msra.mxu0 %v919
        %944 = vmatprep.subr.bf16.mxu0 0
        %945 = vmatpush1.bf16.msra.mxu0 0
        %946 = vmatprep.subr.bf16.mxu0 0
        %947 = vmatpush1.bf16.msra.mxu0 0
        %948 = vmatprep.subr.bf16.mxu0 0
        %949 = vmatpush1.bf16.msra.mxu0 0
        %950 = vmatprep.subr.bf16.mxu0 0
        %951 = vmatpush1.bf16.msra.mxu0 0
        %952 = vmatprep.subr.bf16.mxu0 0
        %953 = vmatpush1.bf16.msra.mxu0 0
        %954 = vmatprep.subr.bf16.mxu0 0
        %955 = vmatpush1.bf16.msra.mxu0 0
        %956 = vmatprep.subr.bf16.mxu0 0
        %957 = vmatpush1.bf16.msra.mxu0 0
        %958 = vmatprep.subr.bf16.mxu0 0
        %959 = vmatpush1.bf16.msra.mxu0 0
        %960 = vmatprep.mubr.bf16.mxu0 0
        %961 = vmatmul.mubr.bf16.gmra.mrb[0].mxu0 %v869
        %v962 = vpop.f32.mrb[0].mxu0
        %v963 = vadd.f32 0.0, %v962
        %v964 = vpop.f32.mrb[0].mxu0
        %v965 = vpop.f32.mrb[0].mxu0
        %v966 = vadd.f32 0.0, %v965
        %v967 = vpop.f32.mrb[0].mxu0
        %968 = vmatprep.mubr.bf16.mxu0 0
        %969 = vmatmul.mubr.bf16.gmra.mrb[0].mxu0 %v877
        %v970 = vpop.f32.mrb[0].mxu0
        %v971 = vadd.f32 0.0, %v970
        %v972 = vpop.f32.mrb[0].mxu0
        %v973 = vpop.f32.mrb[0].mxu0
        %v974 = vadd.f32 0.0, %v973
        %v975 = vpop.f32.mrb[0].mxu0
        %976 = vdwg.mxu0
        %v993 = vunpack.c.l.b16 %v824
        %v994 = vunpack.c.l.b16 %v825
        %v995 = vunpack.c.l.b16 %v826
        %v996 = vunpack.c.l.b16 %v827
        %v997 = vunpack.c.l.b16 %v828
        %v998 = vunpack.c.l.b16 %v829
        %v999 = vunpack.c.l.b16 %v830
        %v1000 = vunpack.c.l.b16 %v831
        %v1001 = vunpack.c.l.b16 %v832
        %v1002 = vunpack.c.l.b16 %v833
        %v1003 = vunpack.c.l.b16 %v834
        %v1004 = vunpack.c.l.b16 %v835
        %v1005 = vunpack.c.l.b16 %v836
        %v1006 = vunpack.c.l.b16 %v837
        %v1007 = vunpack.c.l.b16 %v838
        %v1008 = vunpack.c.l.b16 %v839
        %v1009 = vpack.c.b16 %v994, %v993
        %v1010 = vpack.c.b16 %v996, %v995
        %v1011 = vpack.c.b16 %v998, %v997
        %v1012 = vpack.c.b16 %v1000, %v999
        %v1013 = vpack.c.b16 %v1002, %v1001
        %v1014 = vpack.c.b16 %v1004, %v1003
        %v1015 = vpack.c.b16 %v1006, %v1005
        %v1016 = vpack.c.b16 %v1008, %v1007
        %1025 = vmatprep.subr.bf16.mxu0 0
        %1026 = vmatpush1.bf16.msra.mxu0 %v1009
        %1027 = vmatprep.subr.bf16.mxu0 0
        %1028 = vmatpush1.bf16.msra.mxu0 %v1010
        %1029 = vmatprep.subr.bf16.mxu0 0
        %1030 = vmatpush1.bf16.msra.mxu0 %v1011
        %1031 = vmatprep.subr.bf16.mxu0 0
        %1032 = vmatpush1.bf16.msra.mxu0 %v1012
        %1033 = vmatprep.subr.bf16.mxu0 0
        %1034 = vmatpush1.bf16.msra.mxu0 %v1013
        %1035 = vmatprep.subr.bf16.mxu0 0
        %1036 = vmatpush1.bf16.msra.mxu0 %v1014
        %1037 = vmatprep.subr.bf16.mxu0 0
        %1038 = vmatpush1.bf16.msra.mxu0 %v1015
        %1039 = vmatprep.subr.bf16.mxu0 0
        %1040 = vmatpush1.bf16.msra.mxu0 %v1016
        %1041 = vmatprep.subr.bf16.mxu0 0
        %1042 = vmatpush1.bf16.msra.mxu0 0
        %1043 = vmatprep.subr.bf16.mxu0 0
        %1044 = vmatpush1.bf16.msra.mxu0 0
        %1045 = vmatprep.subr.bf16.mxu0 0
        %1046 = vmatpush1.bf16.msra.mxu0 0
        %1047 = vmatprep.subr.bf16.mxu0 0
        %1048 = vmatpush1.bf16.msra.mxu0 0
        %1049 = vmatprep.subr.bf16.mxu0 0
        %1050 = vmatpush1.bf16.msra.mxu0 0
        %1051 = vmatprep.subr.bf16.mxu0 0
        %1052 = vmatpush1.bf16.msra.mxu0 0
        %1053 = vmatprep.subr.bf16.mxu0 0
        %1054 = vmatpush1.bf16.msra.mxu0 0
        %1055 = vmatprep.subr.bf16.mxu0 0
        %1056 = vmatpush1.bf16.msra.mxu0 0
        %1057 = vmatprep.mubr.bf16.mxu0 0
        %1058 = vmatmul.mubr.bf16.gmra.mrb[0].mxu0 %v822
        %v1059 = vpop.f32.mrb[0].mxu0
        %v1060 = vadd.f32 %v963, %v1059
        %v1061 = vpop.f32.mrb[0].mxu0
        %v1062 = vpop.f32.mrb[0].mxu0
        %v1063 = vadd.f32 %v966, %v1062
        %v1064 = vpop.f32.mrb[0].mxu0
        %1065 = vmatprep.mubr.bf16.mxu0 0
        %1066 = vmatmul.mubr.bf16.gmra.mrb[0].mxu0 %v823
        %v1067 = vpop.f32.mrb[0].mxu0
        %v1068 = vadd.f32 %v971, %v1067
        %v1069 = vpop.f32.mrb[0].mxu0
        %v1070 = vpop.f32.mrb[0].mxu0
        %v1071 = vadd.f32 %v974, %v1070
        %v1072 = vpop.f32.mrb[0].mxu0
        %1073 = vdwg.mxu0
        %v1074 = vld [vmem:[#allocation8 + $0x80] sm:$0xf]
        %v1075 = vld [vmem:[#allocation8 + $0x84] sm:$0xf]
        %v1076 = vld [vmem:[#allocation8 + $0x88] sm:$0xf]
        %v1077 = vld [vmem:[#allocation8 + $0x8c] sm:$0xf]
        %v1078 = vld [vmem:[#allocation8 + $0x90] sm:$0xf]
        %v1079 = vld [vmem:[#allocation8 + $0x94] sm:$0xf]
        %v1080 = vld [vmem:[#allocation8 + $0x98] sm:$0xf]
        %v1081 = vld [vmem:[#allocation8 + $0x9c] sm:$0xf]
        %v1082 = vld [vmem:[#allocation8 + $0xa0] sm:$0xf]
        %v1083 = vld [vmem:[#allocation8 + $0xa4] sm:$0xf]
        %v1084 = vld [vmem:[#allocation8 + $0xa8] sm:$0xf]
        %v1085 = vld [vmem:[#allocation8 + $0xac] sm:$0xf]
        %v1086 = vld [vmem:[#allocation8 + $0xb0] sm:$0xf]
        %v1087 = vld [vmem:[#allocation8 + $0xb4] sm:$0xf]
        %v1088 = vld [vmem:[#allocation8 + $0xb8] sm:$0xf]
        %v1089 = vld [vmem:[#allocation8 + $0xbc] sm:$0xf]
        %vm1093 = vcmask 1046528
        %v1094 = vrot.slane %v822, 1
        %v1095 = vrot.slane %v823, 1
        %v1096 = vsel %vm1093, %v1094, %v1095
        %v1097 = vrot.slane %v840, 1
        %v1098 = vsel %vm1093, %v1095, %v1097
        %v1117 = vunpack.c.l.b16 %v1074
        %v1118 = vunpack.c.l.b16 %v1075
        %v1119 = vunpack.c.l.b16 %v1076
        %v1120 = vunpack.c.l.b16 %v1077
        %v1121 = vunpack.c.l.b16 %v1078
        %v1122 = vunpack.c.l.b16 %v1079
        %v1123 = vunpack.c.l.b16 %v1080
        %v1124 = vunpack.c.l.b16 %v1081
        %v1125 = vunpack.c.l.b16 %v1082
        %v1126 = vunpack.c.l.b16 %v1083
        %v1127 = vunpack.c.l.b16 %v1084
        %v1128 = vunpack.c.l.b16 %v1085
        %v1129 = vunpack.c.l.b16 %v1086
        %v1130 = vunpack.c.l.b16 %v1087
        %v1131 = vunpack.c.l.b16 %v1088
        %v1132 = vunpack.c.l.b16 %v1089
        %v1133 = vpack.c.b16 %v1118, %v1117
        %v1134 = vpack.c.b16 %v1120, %v1119
        %v1135 = vpack.c.b16 %v1122, %v1121
        %v1136 = vpack.c.b16 %v1124, %v1123
        %v1137 = vpack.c.b16 %v1126, %v1125
        %v1138 = vpack.c.b16 %v1128, %v1127
        %v1139 = vpack.c.b16 %v1130, %v1129
        %v1140 = vpack.c.b16 %v1132, %v1131
        %1149 = vmatprep.subr.bf16.mxu0 0
        %1150 = vmatpush1.bf16.msra.mxu0 %v1133
        %1151 = vmatprep.subr.bf16.mxu0 0
        %1152 = vmatpush1.bf16.msra.mxu0 %v1134
        %1153 = vmatprep.subr.bf16.mxu0 0
        %1154 = vmatpush1.bf16.msra.mxu0 %v1135
        %1155 = vmatprep.subr.bf16.mxu0 0
        %1156 = vmatpush1.bf16.msra.mxu0 %v1136
        %1157 = vmatprep.subr.bf16.mxu0 0
        %1158 = vmatpush1.bf16.msra.mxu0 %v1137
        %1159 = vmatprep.subr.bf16.mxu0 0
        %1160 = vmatpush1.bf16.msra.mxu0 %v1138
        %1161 = vmatprep.subr.bf16.mxu0 0
        %1162 = vmatpush1.bf16.msra.mxu0 %v1139
        %1163 = vmatprep.subr.bf16.mxu0 0
        %1164 = vmatpush1.bf16.msra.mxu0 %v1140
        %1165 = vmatprep.subr.bf16.mxu0 0
        %1166 = vmatpush1.bf16.msra.mxu0 0
        %1167 = vmatprep.subr.bf16.mxu0 0
        %1168 = vmatpush1.bf16.msra.mxu0 0
        %1169 = vmatprep.subr.bf16.mxu0 0
        %1170 = vmatpush1.bf16.msra.mxu0 0
        %1171 = vmatprep.subr.bf16.mxu0 0
        %1172 = vmatpush1.bf16.msra.mxu0 0
        %1173 = vmatprep.subr.bf16.mxu0 0
        %1174 = vmatpush1.bf16.msra.mxu0 0
        %1175 = vmatprep.subr.bf16.mxu0 0
        %1176 = vmatpush1.bf16.msra.mxu0 0
        %1177 = vmatprep.subr.bf16.mxu0 0
        %1178 = vmatpush1.bf16.msra.mxu0 0
        %1179 = vmatprep.subr.bf16.mxu0 0
        %1180 = vmatpush1.bf16.msra.mxu0 0
        %1181 = vmatprep.mubr.bf16.mxu0 0
        %1182 = vmatmul.mubr.bf16.gmra.mrb[0].mxu0 %v1096
        %v1183 = vpop.f32.mrb[0].mxu0
        %v1184 = vadd.f32 0.0, %v1183
        %v1185 = vpop.f32.mrb[0].mxu0
        %v1186 = vpop.f32.mrb[0].mxu0
        %v1187 = vadd.f32 0.0, %v1186
        %v1188 = vpop.f32.mrb[0].mxu0
        %1189 = vmatprep.mubr.bf16.mxu0 0
        %1190 = vmatmul.mubr.bf16.gmra.mrb[0].mxu0 %v1098
        %v1191 = vpop.f32.mrb[0].mxu0
        %v1192 = vadd.f32 0.0, %v1191
        %v1193 = vpop.f32.mrb[0].mxu0
        %v1194 = vpop.f32.mrb[0].mxu0
        %v1195 = vadd.f32 0.0, %v1194
        %v1196 = vpop.f32.mrb[0].mxu0
        %1197 = vdwg.mxu0
        %v1198 = vadd.f32 %v1060, %v1184
        %v1199 = vadd.f32 %v1063, %v1187
        %v1200 = vadd.f32 %v1068, %v1192
        %v1201 = vadd.f32 %v1071, %v1195
        %v1202 = vld [vmem:[%s5] sm:$0x1]
        %v1204 = vlaneseq
        %v1205 = vshrl.u32 %v1204, 7
        %v1206 = vsub.s32 0, %v1205
        %v1207 = vrot.slane %v1202, %v1206
        %v1209 = vadd.f32 %v1198, %v1207
        %v1210 = vadd.f32 %v1199, %v1207
        %v1211 = vadd.f32 %v1200, %v1207
        %v1212 = vadd.f32 %v1201, %v1207
        %1213 = vst [vmem:[%s363] sm:$0xff] %v1209
        %1214 = vst [vmem:[%s363 + $0x8] sm:$0xff] %v1210
        %1215 = vst [vmem:[%s363 + $0x10] sm:$0xff] %v1211
        %1216 = vst [vmem:[%s363 + $0x18] sm:$0xff] %v1212
        %s1217 = sand.u32 %s191, 1
        %s1218 = scalar_lea.sflag [#allocation4], %s1217
        %s1219 = sand.u32 %s191, 1
        %s1220 = smul.addr %s1219, 32
        %s1221 = scalar_lea.vmem [#allocation10], %s1220
        // Predicated region
        $region61: #{tpu_custom_call.1} parent=43 // pred_check
          %p1222 = pneg %p201
        $region62: #{tpu_custom_call.1} parent=43 // pred_check_branch
          %1224 = sbr.rel (%p1222) target = $region64
        $region63: #{tpu_custom_call.1} parent=43 // pred_region
          %s1225 = smul.u32 4, %s32
          %s1227 = ssub.s32 512, 512
          %1228 = vsyncadd %s1218, %s1227
          %s1229 = smul.addr %s31, 4
          %s1230 = sadd.s32 %s1225, %s1229
          %s1231 = smul.addr %s1230, 128
          %s1232 = scalar_lea.hbm %s6, %s1231
          %s1233 = sshll.u32 %s1221, 4
          %s1234 = int_to_ptr.vmem [resolvable:$true] %s1233
          %1239 = dma.vmem_to_hbm [thread:$0]  %s1234, 512, %s1232, %s1218, 128, 128, 8
        $region64: #{tpu_custom_call.1} parent=43 // pred_fallthru
          _
      $region44: #{tpu_custom_call.1} parent=5 // pred_fallthru
        _
      %p1240 = scmp.le.s32.totalorder 2, %s22
      // Predicated region
      $region65: #{tpu_custom_call.1} parent=5 // pred_check
        %p1241 = pneg %p1240
      $region66: #{tpu_custom_call.1} parent=5 // pred_check_branch
        %1243 = sbr.rel (%p1241) target = $region68
      $region67: #{tpu_custom_call.1} parent=5 // pred_region
        %s1244 = ssub.s32 %s22, 2
        // Predicated region
        $region69: #{tpu_custom_call.1} parent=67 // pred_check
          %p1245 = pneg %p207
        $region70: #{tpu_custom_call.1} parent=67 // pred_check_branch
          %1247 = sbr.rel (%p1245) target = $region72
        $region71: #{tpu_custom_call.1} parent=67 // pred_region
          %s1248 = sand.u32 %s192, 1
          %s1249 = scalar_lea.sflag [#allocation4], %s1248
          %s1250 = sand.u32 %s192, 1
          %s1251 = smul.addr %s1250, 32
          %s1252 = scalar_lea.vmem [#allocation10], %s1251
          %1253 = dma.done %s1249, 512
        $region72: #{tpu_custom_call.1} parent=67 // pred_fallthru
          _
      $region68: #{tpu_custom_call.1} parent=5 // pred_fallthru
        _
    $region6: #{tpu_custom_call.1} parent=1 // loop_footer
      %s26 = sadd.s32 1, %s22
    $region7: #{tpu_custom_call.1} parent=1 // loop_footer_branch
      %21 = sbr.rel target = $region3
    $region8: #{tpu_custom_call.1} parent=1 // loop_exit
      _
    %1254 = vsyncpa [#allocation3], 1
    %s1255 = scalar_lea.sflag [#allocation3], 1
    %1256 = vsyncpa %s1255, 1
    %1257 = vsyncpa [#allocation6], 1
    %s1258 = scalar_lea.sflag [#allocation6], 1
    %1259 = vsyncpa %s1258, 1
    %1260 = vsyncpa [#allocation9], 1
    %1261 = vsyncpa [#allocation4], 1
    %s1262 = scalar_lea.sflag [#allocation4], 1
    %1263 = vsyncpa %s1262, 1

</llo_original>
